<compile_context>
chip_gen: v7x
topology: tpu7x:2x2x1
jax: 0.10.0
libtpu: 0.0.40
codegen_flags: <defaults>
</compile_context>

<pallas_src>
import jax
import jax.numpy as jnp
from jax.experimental import pallas as pl
from jax.experimental.pallas import tpu as pltpu

_LANE = 128
_SUBLANE = 8


def _round_up(x, m):
    return ((x + m - 1) // m) * m


def _cdiv(a, b):
    return (a + b - 1) // b


def _ffnn_kernel(tok_ref, w1f_ref, b1_ref, w2_ref, b2_ref, w3_ref, b3_ref, o_ref):
    tok = tok_ref[...]                         # (TB, L)  int32 token ids
    tb, seq_len = tok.shape
    lvp, h1p = w1f_ref.shape
    vocab_p = lvp // seq_len                   # padded vocab (multiple of 128)

    # ---- fused embedding gather + flatten + lin1 ----------------------------
    # flatten(emb[tok]) @ W1^T  ==  sum_l  onehot(tok[:, l]) @ W1_fold[l]
    # with W1_fold precomputed at init (embedding folded into W1).  One dense
    # (TB, Vp) @ (Vp, H1p) MXU push per position, accumulated in f32.
    vocab_iota = jax.lax.broadcasted_iota(jnp.int32, (tb, vocab_p), 1)
    acc1 = jnp.zeros((tb, h1p), jnp.float32)
    for l in range(seq_len):                   # small static unroll (L=8)
        onehot = (tok[:, l:l + 1] == vocab_iota).astype(jnp.bfloat16)  # (TB, Vp)
        acc1 = acc1 + jnp.dot(onehot,
                              w1f_ref[l * vocab_p:(l + 1) * vocab_p, :],
                              preferred_element_type=jnp.float32)
    h1 = jnp.maximum(acc1 + b1_ref[...], 0.0)          # bias + ReLU in f32

    # ---- lin2 + ReLU (all dims padded to 128 lanes) --------------------------
    h2 = jnp.dot(h1.astype(jnp.bfloat16), w2_ref[...],
                 preferred_element_type=jnp.float32)
    h2 = jnp.maximum(h2 + b2_ref[...], 0.0)

    # ---- lin3 + sigmoid (lane-dense padded output, stored bf16) --------------
    z = jnp.dot(h2.astype(jnp.bfloat16), w3_ref[...],
                preferred_element_type=jnp.float32) + b3_ref[...]
    # Sigmoid via exp + approximate reciprocal: both land on the EUP slot.
    o_ref[...] = pl.reciprocal(1.0 + jnp.exp(-z), approx=True).astype(o_ref.dtype)


def prepare_ffnn(embedding_weights, params):
    """One-time (init) preparation:
      * fold the embedding table into W1 -> (L*Vp, H1p) bf16,
      * transpose remaining weights to (in, out),
      * zero-pad H1/H2/H3 to 128 lanes and vocab to a lane multiple,
      * cast MXU operands to bf16 (biases stay f32).
    Keeps all per-call overhead out of the hot path."""
    (w1, b1), (w2, b2), (w3, b3) = params
    vocab, emb_dim = embedding_weights.shape
    h1, d_in = w1.shape
    h2 = w2.shape[0]
    h3 = w3.shape[0]
    seq_len = d_in // emb_dim

    vocab_p = _round_up(vocab, _LANE)
    h1_p = _round_up(h1, _LANE)
    h2_p = _round_up(h2, _LANE)
    h3_p = _round_up(h3, _LANE)

    # Fold embedding into W1 (f32 math, single bf16 rounding at the end).
    emb_p = jnp.pad(embedding_weights.astype(jnp.float32),
                    ((0, vocab_p - vocab), (0, 0)))                 # (Vp, E)
    w1t = w1.T.astype(jnp.float32).reshape(seq_len, emb_dim, h1)    # (L, E, H1)
    w1_fold = jnp.einsum('ve,leh->lvh', emb_p, w1t)                 # (L, Vp, H1)
    w1_fold = w1_fold.reshape(seq_len * vocab_p, h1)
    w1_fold = jnp.pad(w1_fold, ((0, 0), (0, h1_p - h1)))            # (L*Vp, H1p)

    w2t = jnp.pad(w2.T.astype(jnp.float32), ((0, h1_p - h1), (0, h2_p - h2)))
    w3t = jnp.pad(w3.T.astype(jnp.float32), ((0, h2_p - h2), (0, h3_p - h3)))
    b1_p = jnp.pad(b1.astype(jnp.float32), (0, h1_p - h1)).reshape(1, -1)
    b2_p = jnp.pad(b2.astype(jnp.float32), (0, h2_p - h2)).reshape(1, -1)
    b3_p = jnp.pad(b3.astype(jnp.float32), (0, h3_p - h3)).reshape(1, -1)

    return dict(
        w1f=w1_fold.astype(jnp.bfloat16),      # (L*Vp, H1p)  embedding folded in
        b1=b1_p,                               # (1, H1p) f32
        w2=w2t.astype(jnp.bfloat16),           # (H1p, H2p)
        b2=b2_p,                               # (1, H2p) f32
        w3=w3t.astype(jnp.bfloat16),           # (H2p, H3p) lane-dense
        b3=b3_p,                               # (1, H3p) f32
        h3=h3,
        seq_len=seq_len,
    )


def ffnn_forward(text, prepared, block_b=256):
    w1f, b1 = prepared["w1f"], prepared["b1"]
    w2, b2 = prepared["w2"], prepared["b2"]
    w3, b3 = prepared["w3"], prepared["b3"]
    h3 = prepared["h3"]

    batch, seq_len = text.shape
    lvp, h1_p = w1f.shape
    h2_p = w2.shape[1]
    h3_p = w3.shape[1]

    # ---- batch tiling: minimal padding + >=2 steps for v7x megacore ----------
    batch_p8 = _round_up(batch, _SUBLANE)
    if batch_p8 > block_b:
        n_tiles = _cdiv(batch_p8, block_b)     # several tiles, sized from batch
    elif batch_p8 >= 2 * _LANE:
        n_tiles = 2                            # split so both v7x TCs get work
    else:
        n_tiles = 1
    if n_tiles == 1:
        tb = batch_p8                          # block == full array dim -> OK
    else:
        tb = _round_up(_cdiv(batch_p8, n_tiles), 16)  # 16: bf16 output sublanes
    batch_p = tb * n_tiles

    tokens = text.astype(jnp.int32)
    if batch_p != batch:
        tokens = jnp.pad(tokens, ((0, batch_p - batch), (0, 0)))

    out = pl.pallas_call(
        _ffnn_kernel,
        out_shape=jax.ShapeDtypeStruct((batch_p, h3_p), jnp.bfloat16),
        grid=(n_tiles,),
        in_specs=[
            pl.BlockSpec((tb, seq_len), lambda i: (i, 0)),    # token ids (stream)
            pl.BlockSpec((lvp, h1_p), lambda i: (0, 0)),      # W1_fold (resident)
            pl.BlockSpec((1, h1_p), lambda i: (0, 0)),        # b1
            pl.BlockSpec((h1_p, h2_p), lambda i: (0, 0)),     # W2^T
            pl.BlockSpec((1, h2_p), lambda i: (0, 0)),        # b2
            pl.BlockSpec((h2_p, h3_p), lambda i: (0, 0)),     # W3^T (padded)
            pl.BlockSpec((1, h3_p), lambda i: (0, 0)),        # b3 (padded)
        ],
        out_specs=pl.BlockSpec((tb, h3_p), lambda i: (i, 0)),
        compiler_params=pltpu.CompilerParams(
            dimension_semantics=("parallel",)),
    )(tokens, w1f, b1, w2, b2, w3, b3)

    return out[:batch, :h3].astype(jnp.float32)


def _reference_forward(text, embedding_weights, params):
    (w1, b1), (w2, b2), (w3, b3) = params
    x = jnp.take(embedding_weights, text, axis=0).reshape(text.shape[0], -1)
    x = jnp.maximum(x @ w1.T + b1, 0.0)
    x = jnp.maximum(x @ w2.T + b2, 0.0)
    x = x @ w3.T + b3
    return jax.nn.sigmoid(x)


if __name__ == "__main__":
    vocab_size = 50
    emb_dim = 16
    input_len = 8                       # sequence length
    neurons_each_layer = (64, 32, 8)    # (H1, H2, H3)
    batch = 8

    key = jax.random.PRNGKey(0)
    k_emb, k_tok, k_w1, k_b1, k_w2, k_b2, k_w3, k_b3 = jax.random.split(key, 8)

    # nn.Embedding.from_pretrained(embedding_weights): (vocab, emb_dim)
    embedding_weights = jax.random.normal(k_emb, (vocab_size, emb_dim), jnp.float32)

    d_in = input_len * emb_dim
    h1, h2, h3 = neurons_each_layer
    # Deterministic synthetic Linear params, PyTorch layout (out, in).
    params = (
        (0.05 * jax.random.normal(k_w1, (h1, d_in), jnp.float32),
         0.05 * jax.random.normal(k_b1, (h1,), jnp.float32)),
        (0.05 * jax.random.normal(k_w2, (h2, h1), jnp.float32),
         0.05 * jax.random.normal(k_b2, (h2,), jnp.float32)),
        (0.05 * jax.random.normal(k_w3, (h3, h2), jnp.float32),
         0.05 * jax.random.normal(k_b3, (h3,), jnp.float32)),
    )

    text = jax.random.randint(k_tok, (batch, input_len), 0, vocab_size, jnp.int32)

    prepared = prepare_ffnn(embedding_weights, params)    # one-time init work
    out = ffnn_forward(text, prepared)
    out = jax.block_until_ready(out)

    ref = _reference_forward(text, embedding_weights, params)
    assert out.shape == (batch, h3), out.shape
    # bf16 MXU operands + bf16 output store + approx-reciprocal sigmoid
    # -> relaxed tolerance.
    assert jnp.allclose(out, ref, atol=1e-2, rtol=1e-2), (
        float(jnp.max(jnp.abs(out - ref))))

    print("KERNEL_OK")
</pallas_src>

<mosaic_0001>
module attributes {stable_mosaic.version = 11 : i64} {
  func.func @_ffnn_kernel(%arg0: i32, %arg1: memref<8x8xi32, #tpu.memory_space<vmem>>, %arg2: memref<1024x128xbf16, #tpu.memory_space<vmem>>, %arg3: memref<1x128xf32, #tpu.memory_space<vmem>>, %arg4: memref<128x128xbf16, #tpu.memory_space<vmem>>, %arg5: memref<1x128xf32, #tpu.memory_space<vmem>>, %arg6: memref<128x128xbf16, #tpu.memory_space<vmem>>, %arg7: memref<1x128xf32, #tpu.memory_space<vmem>>, %arg8: memref<8x128xbf16, #tpu.memory_space<vmem>>) attributes {dimension_semantics = [#tpu.dimension_semantics<parallel>], iteration_bounds = array<i64: 1>, scalar_prefetch = 0 : i64, scratch_operands = 0 : i64, tpu.core_type = #tpu.core_type<tc>, window_params = [{transform_indices = @transform_0, window_bounds = array<i64: 8, 8>}, {pipeline_mode = #tpu.pipeline_mode<synchronous>, transform_indices = @transform_1, window_bounds = array<i64: 1024, 128>}, {pipeline_mode = #tpu.pipeline_mode<synchronous>, transform_indices = @transform_2, window_bounds = array<i64: 1, 128>}, {pipeline_mode = #tpu.pipeline_mode<synchronous>, transform_indices = @transform_3, window_bounds = array<i64: 128, 128>}, {pipeline_mode = #tpu.pipeline_mode<synchronous>, transform_indices = @transform_4, window_bounds = array<i64: 1, 128>}, {pipeline_mode = #tpu.pipeline_mode<synchronous>, transform_indices = @transform_5, window_bounds = array<i64: 128, 128>}, {pipeline_mode = #tpu.pipeline_mode<synchronous>, transform_indices = @transform_6, window_bounds = array<i64: 1, 128>}, {transform_indices = @transform_7, window_bounds = array<i64: 8, 128>}]} {
    %c0 = arith.constant 0 : index
    %c0_0 = arith.constant 0 : index
    %0 = vector.load %arg1[%c0, %c0_0] : memref<8x8xi32, #tpu.memory_space<vmem>>, vector<8x8xi32>
    %1 = tpu.iota {dimensions = array<i32: 1>} : vector<8x128xi32>
    %cst = arith.constant 0.000000e+00 : f32
    %2 = vector.broadcast %cst : f32 to vector<8x128xf32>
    %3 = vector.extract_strided_slice %0 {offsets = [0, 0], sizes = [8, 1], strides = [1, 1]} : vector<8x8xi32> to vector<8x1xi32>
    %4 = vector.broadcast %3 : vector<8x1xi32> to vector<8x128xi32>
    %5 = arith.cmpi eq, %4, %1 : vector<8x128xi32>
    %6 = arith.extui %5 : vector<8x128xi1> to vector<8x128xi32>
    %7 = arith.sitofp %6 : vector<8x128xi32> to vector<8x128xf32>
    %8 = arith.truncf %7 : vector<8x128xf32> to vector<8x128xbf16>
    %c0_1 = arith.constant 0 : index
    %c0_2 = arith.constant 0 : index
    %9 = vector.load %arg2[%c0_1, %c0_2] : memref<1024x128xbf16, #tpu.memory_space<vmem>>, vector<128x128xbf16>
    %cst_3 = arith.constant dense<0.000000e+00> : vector<8x128xf32>
    %10 = tpu.matmul %8, %9, %cst_3 {dimension_numbers = #tpu.dot_dimension_numbers<[1], [0], [0], [1], [0, 0, 1, 1], [], []>} : vector<8x128xbf16>, vector<128x128xbf16>, vector<8x128xf32> -> vector<8x128xf32>
    %11 = arith.addf %2, %10 : vector<8x128xf32>
    %12 = vector.extract_strided_slice %0 {offsets = [0, 1], sizes = [8, 1], strides = [1, 1]} : vector<8x8xi32> to vector<8x1xi32>
    %13 = vector.broadcast %12 : vector<8x1xi32> to vector<8x128xi32>
    %14 = arith.cmpi eq, %13, %1 : vector<8x128xi32>
    %15 = arith.extui %14 : vector<8x128xi1> to vector<8x128xi32>
    %16 = arith.sitofp %15 : vector<8x128xi32> to vector<8x128xf32>
    %17 = arith.truncf %16 : vector<8x128xf32> to vector<8x128xbf16>
    %c128 = arith.constant 128 : index
    %c0_4 = arith.constant 0 : index
    %18 = vector.load %arg2[%c128, %c0_4] : memref<1024x128xbf16, #tpu.memory_space<vmem>>, vector<128x128xbf16>
    %cst_5 = arith.constant dense<0.000000e+00> : vector<8x128xf32>
    %19 = tpu.matmul %17, %18, %cst_5 {dimension_numbers = #tpu.dot_dimension_numbers<[1], [0], [0], [1], [0, 0, 1, 1], [], []>} : vector<8x128xbf16>, vector<128x128xbf16>, vector<8x128xf32> -> vector<8x128xf32>
    %20 = arith.addf %11, %19 : vector<8x128xf32>
    %21 = vector.extract_strided_slice %0 {offsets = [0, 2], sizes = [8, 1], strides = [1, 1]} : vector<8x8xi32> to vector<8x1xi32>
    %22 = vector.broadcast %21 : vector<8x1xi32> to vector<8x128xi32>
    %23 = arith.cmpi eq, %22, %1 : vector<8x128xi32>
    %24 = arith.extui %23 : vector<8x128xi1> to vector<8x128xi32>
    %25 = arith.sitofp %24 : vector<8x128xi32> to vector<8x128xf32>
    %26 = arith.truncf %25 : vector<8x128xf32> to vector<8x128xbf16>
    %c256 = arith.constant 256 : index
    %c0_6 = arith.constant 0 : index
    %27 = vector.load %arg2[%c256, %c0_6] : memref<1024x128xbf16, #tpu.memory_space<vmem>>, vector<128x128xbf16>
    %cst_7 = arith.constant dense<0.000000e+00> : vector<8x128xf32>
    %28 = tpu.matmul %26, %27, %cst_7 {dimension_numbers = #tpu.dot_dimension_numbers<[1], [0], [0], [1], [0, 0, 1, 1], [], []>} : vector<8x128xbf16>, vector<128x128xbf16>, vector<8x128xf32> -> vector<8x128xf32>
    %29 = arith.addf %20, %28 : vector<8x128xf32>
    %30 = vector.extract_strided_slice %0 {offsets = [0, 3], sizes = [8, 1], strides = [1, 1]} : vector<8x8xi32> to vector<8x1xi32>
    %31 = vector.broadcast %30 : vector<8x1xi32> to vector<8x128xi32>
    %32 = arith.cmpi eq, %31, %1 : vector<8x128xi32>
    %33 = arith.extui %32 : vector<8x128xi1> to vector<8x128xi32>
    %34 = arith.sitofp %33 : vector<8x128xi32> to vector<8x128xf32>
    %35 = arith.truncf %34 : vector<8x128xf32> to vector<8x128xbf16>
    %c384 = arith.constant 384 : index
    %c0_8 = arith.constant 0 : index
    %36 = vector.load %arg2[%c384, %c0_8] : memref<1024x128xbf16, #tpu.memory_space<vmem>>, vector<128x128xbf16>
    %cst_9 = arith.constant dense<0.000000e+00> : vector<8x128xf32>
    %37 = tpu.matmul %35, %36, %cst_9 {dimension_numbers = #tpu.dot_dimension_numbers<[1], [0], [0], [1], [0, 0, 1, 1], [], []>} : vector<8x128xbf16>, vector<128x128xbf16>, vector<8x128xf32> -> vector<8x128xf32>
    %38 = arith.addf %29, %37 : vector<8x128xf32>
    %39 = vector.extract_strided_slice %0 {offsets = [0, 4], sizes = [8, 1], strides = [1, 1]} : vector<8x8xi32> to vector<8x1xi32>
    %40 = vector.broadcast %39 : vector<8x1xi32> to vector<8x128xi32>
    %41 = arith.cmpi eq, %40, %1 : vector<8x128xi32>
    %42 = arith.extui %41 : vector<8x128xi1> to vector<8x128xi32>
    %43 = arith.sitofp %42 : vector<8x128xi32> to vector<8x128xf32>
    %44 = arith.truncf %43 : vector<8x128xf32> to vector<8x128xbf16>
    %c512 = arith.constant 512 : index
    %c0_10 = arith.constant 0 : index
    %45 = vector.load %arg2[%c512, %c0_10] : memref<1024x128xbf16, #tpu.memory_space<vmem>>, vector<128x128xbf16>
    %cst_11 = arith.constant dense<0.000000e+00> : vector<8x128xf32>
    %46 = tpu.matmul %44, %45, %cst_11 {dimension_numbers = #tpu.dot_dimension_numbers<[1], [0], [0], [1], [0, 0, 1, 1], [], []>} : vector<8x128xbf16>, vector<128x128xbf16>, vector<8x128xf32> -> vector<8x128xf32>
    %47 = arith.addf %38, %46 : vector<8x128xf32>
    %48 = vector.extract_strided_slice %0 {offsets = [0, 5], sizes = [8, 1], strides = [1, 1]} : vector<8x8xi32> to vector<8x1xi32>
    %49 = vector.broadcast %48 : vector<8x1xi32> to vector<8x128xi32>
    %50 = arith.cmpi eq, %49, %1 : vector<8x128xi32>
    %51 = arith.extui %50 : vector<8x128xi1> to vector<8x128xi32>
    %52 = arith.sitofp %51 : vector<8x128xi32> to vector<8x128xf32>
    %53 = arith.truncf %52 : vector<8x128xf32> to vector<8x128xbf16>
    %c640 = arith.constant 640 : index
    %c0_12 = arith.constant 0 : index
    %54 = vector.load %arg2[%c640, %c0_12] : memref<1024x128xbf16, #tpu.memory_space<vmem>>, vector<128x128xbf16>
    %cst_13 = arith.constant dense<0.000000e+00> : vector<8x128xf32>
    %55 = tpu.matmul %53, %54, %cst_13 {dimension_numbers = #tpu.dot_dimension_numbers<[1], [0], [0], [1], [0, 0, 1, 1], [], []>} : vector<8x128xbf16>, vector<128x128xbf16>, vector<8x128xf32> -> vector<8x128xf32>
    %56 = arith.addf %47, %55 : vector<8x128xf32>
    %57 = vector.extract_strided_slice %0 {offsets = [0, 6], sizes = [8, 1], strides = [1, 1]} : vector<8x8xi32> to vector<8x1xi32>
    %58 = vector.broadcast %57 : vector<8x1xi32> to vector<8x128xi32>
    %59 = arith.cmpi eq, %58, %1 : vector<8x128xi32>
    %60 = arith.extui %59 : vector<8x128xi1> to vector<8x128xi32>
    %61 = arith.sitofp %60 : vector<8x128xi32> to vector<8x128xf32>
    %62 = arith.truncf %61 : vector<8x128xf32> to vector<8x128xbf16>
    %c768 = arith.constant 768 : index
    %c0_14 = arith.constant 0 : index
    %63 = vector.load %arg2[%c768, %c0_14] : memref<1024x128xbf16, #tpu.memory_space<vmem>>, vector<128x128xbf16>
    %cst_15 = arith.constant dense<0.000000e+00> : vector<8x128xf32>
    %64 = tpu.matmul %62, %63, %cst_15 {dimension_numbers = #tpu.dot_dimension_numbers<[1], [0], [0], [1], [0, 0, 1, 1], [], []>} : vector<8x128xbf16>, vector<128x128xbf16>, vector<8x128xf32> -> vector<8x128xf32>
    %65 = arith.addf %56, %64 : vector<8x128xf32>
    %66 = vector.extract_strided_slice %0 {offsets = [0, 7], sizes = [8, 1], strides = [1, 1]} : vector<8x8xi32> to vector<8x1xi32>
    %67 = vector.broadcast %66 : vector<8x1xi32> to vector<8x128xi32>
    %68 = arith.cmpi eq, %67, %1 : vector<8x128xi32>
    %69 = arith.extui %68 : vector<8x128xi1> to vector<8x128xi32>
    %70 = arith.sitofp %69 : vector<8x128xi32> to vector<8x128xf32>
    %71 = arith.truncf %70 : vector<8x128xf32> to vector<8x128xbf16>
    %c896 = arith.constant 896 : index
    %c0_16 = arith.constant 0 : index
    %72 = vector.load %arg2[%c896, %c0_16] : memref<1024x128xbf16, #tpu.memory_space<vmem>>, vector<128x128xbf16>
    %cst_17 = arith.constant dense<0.000000e+00> : vector<8x128xf32>
    %73 = tpu.matmul %71, %72, %cst_17 {dimension_numbers = #tpu.dot_dimension_numbers<[1], [0], [0], [1], [0, 0, 1, 1], [], []>} : vector<8x128xbf16>, vector<128x128xbf16>, vector<8x128xf32> -> vector<8x128xf32>
    %74 = arith.addf %65, %73 : vector<8x128xf32>
    %c0_18 = arith.constant 0 : index
    %c0_19 = arith.constant 0 : index
    %75 = vector.load %arg3[%c0_18, %c0_19] : memref<1x128xf32, #tpu.memory_space<vmem>>, vector<1x128xf32>
    %76 = vector.broadcast %75 : vector<1x128xf32> to vector<8x128xf32>
    %77 = arith.addf %74, %76 : vector<8x128xf32>
    %cst_20 = arith.constant 0.000000e+00 : f32
    %78 = vector.broadcast %cst_20 : f32 to vector<8x128xf32>
    %79 = arith.maximumf %77, %78 : vector<8x128xf32>
    %80 = arith.truncf %79 : vector<8x128xf32> to vector<8x128xbf16>
    %c0_21 = arith.constant 0 : index
    %c0_22 = arith.constant 0 : index
    %81 = vector.load %arg4[%c0_21, %c0_22] : memref<128x128xbf16, #tpu.memory_space<vmem>>, vector<128x128xbf16>
    %cst_23 = arith.constant dense<0.000000e+00> : vector<8x128xf32>
    %82 = tpu.matmul %80, %81, %cst_23 {dimension_numbers = #tpu.dot_dimension_numbers<[1], [0], [0], [1], [0, 0, 1, 1], [], []>} : vector<8x128xbf16>, vector<128x128xbf16>, vector<8x128xf32> -> vector<8x128xf32>
    %c0_24 = arith.constant 0 : index
    %c0_25 = arith.constant 0 : index
    %83 = vector.load %arg5[%c0_24, %c0_25] : memref<1x128xf32, #tpu.memory_space<vmem>>, vector<1x128xf32>
    %84 = vector.broadcast %83 : vector<1x128xf32> to vector<8x128xf32>
    %85 = arith.addf %82, %84 : vector<8x128xf32>
    %cst_26 = arith.constant 0.000000e+00 : f32
    %86 = vector.broadcast %cst_26 : f32 to vector<8x128xf32>
    %87 = arith.maximumf %85, %86 : vector<8x128xf32>
    %88 = arith.truncf %87 : vector<8x128xf32> to vector<8x128xbf16>
    %c0_27 = arith.constant 0 : index
    %c0_28 = arith.constant 0 : index
    %89 = vector.load %arg6[%c0_27, %c0_28] : memref<128x128xbf16, #tpu.memory_space<vmem>>, vector<128x128xbf16>
    %cst_29 = arith.constant dense<0.000000e+00> : vector<8x128xf32>
    %90 = tpu.matmul %88, %89, %cst_29 {dimension_numbers = #tpu.dot_dimension_numbers<[1], [0], [0], [1], [0, 0, 1, 1], [], []>} : vector<8x128xbf16>, vector<128x128xbf16>, vector<8x128xf32> -> vector<8x128xf32>
    %c0_30 = arith.constant 0 : index
    %c0_31 = arith.constant 0 : index
    %91 = vector.load %arg7[%c0_30, %c0_31] : memref<1x128xf32, #tpu.memory_space<vmem>>, vector<1x128xf32>
    %92 = vector.broadcast %91 : vector<1x128xf32> to vector<8x128xf32>
    %93 = arith.addf %90, %92 : vector<8x128xf32>
    %cst_32 = arith.constant 0.000000e+00 : f32
    %94 = vector.broadcast %cst_32 : f32 to vector<8x128xf32>
    %95 = arith.subf %94, %93 : vector<8x128xf32>
    %96 = math.exp %95 : vector<8x128xf32>
    %cst_33 = arith.constant 1.000000e+00 : f32
    %97 = vector.broadcast %cst_33 : f32 to vector<8x128xf32>
    %98 = arith.addf %97, %96 : vector<8x128xf32>
    %99 = tpu.reciprocal %98 {approx = true} : vector<8x128xf32> -> vector<8x128xf32>
    %100 = arith.truncf %99 : vector<8x128xf32> to vector<8x128xbf16>
    %c0_34 = arith.constant 0 : index
    %c0_35 = arith.constant 0 : index
    %101 = vector.load %arg8[%c0_34, %c0_35] : memref<8x128xbf16, #tpu.memory_space<vmem>>, vector<8x128xbf16>
    tpu.vector_store %arg8[%c0_34, %c0_35], %100 {strides = array<i32>} : memref<8x128xbf16, #tpu.memory_space<vmem>>, vector<8x128xbf16>,
    return
  }
  func.func @transform_0(%arg0: i32) -> (i32, i32) {
    %c0_i32 = arith.constant 0 : i32
    %c0_i32_0 = arith.constant 0 : i32
    return %arg0, %c0_i32 : i32, i32
  }
  func.func @transform_1(%arg0: i32) -> (i32, i32) {
    %c0_i32 = arith.constant 0 : i32
    %c0_i32_0 = arith.constant 0 : i32
    %c0_i32_1 = arith.constant 0 : i32
    return %c0_i32, %c0_i32_0 : i32, i32
  }
  func.func @transform_2(%arg0: i32) -> (i32, i32) {
    %c0_i32 = arith.constant 0 : i32
    %c0_i32_0 = arith.constant 0 : i32
    %c0_i32_1 = arith.constant 0 : i32
    return %c0_i32, %c0_i32_0 : i32, i32
  }
  func.func @transform_3(%arg0: i32) -> (i32, i32) {
    %c0_i32 = arith.constant 0 : i32
    %c0_i32_0 = arith.constant 0 : i32
    %c0_i32_1 = arith.constant 0 : i32
    return %c0_i32, %c0_i32_0 : i32, i32
  }
  func.func @transform_4(%arg0: i32) -> (i32, i32) {
    %c0_i32 = arith.constant 0 : i32
    %c0_i32_0 = arith.constant 0 : i32
    %c0_i32_1 = arith.constant 0 : i32
    return %c0_i32, %c0_i32_0 : i32, i32
  }
  func.func @transform_5(%arg0: i32) -> (i32, i32) {
    %c0_i32 = arith.constant 0 : i32
    %c0_i32_0 = arith.constant 0 : i32
    %c0_i32_1 = arith.constant 0 : i32
    return %c0_i32, %c0_i32_0 : i32, i32
  }
  func.func @transform_6(%arg0: i32) -> (i32, i32) {
    %c0_i32 = arith.constant 0 : i32
    %c0_i32_0 = arith.constant 0 : i32
    %c0_i32_1 = arith.constant 0 : i32
    return %c0_i32, %c0_i32_0 : i32, i32
  }
  func.func @transform_7(%arg0: i32) -> (i32, i32) {
    %c0_i32 = arith.constant 0 : i32
    %c0_i32_0 = arith.constant 0 : i32
    return %arg0, %c0_i32 : i32, i32
  }
}

</mosaic_0001>

<llo_original>
// kernel: tpu_custom_call.1
$region0: #{tpu_custom_call.1}
  #allocation0 [shape = 'u32[]', space=smem, size = 0x4, offset = 0x4, fixed_abs, tag = 'smem constant byte address 0x4 - core index']
  #allocation1 [shape = 'u32[144,128]{1,0:T(1,128)}', space=vmem, size = 0x12000, scoped, tag = 'internal scratch']
  %s0 = inlined_call_operand.hbm [shape: s32[8,8], index: 0, kind: input, shape index: {}]
  %s1 = inlined_call_operand.hbm [shape: bf16[1024,128], index: 1, kind: input, shape index: {}]
  %s2 = inlined_call_operand.vmem [shape: f32[1,128], index: 2, kind: input, shape index: {}]
  %s3 = inlined_call_operand.hbm [shape: bf16[128,128], index: 3, kind: input, shape index: {}]
  %s4 = inlined_call_operand.vmem [shape: f32[1,128], index: 4, kind: input, shape index: {}]
  %s5 = inlined_call_operand.hbm [shape: bf16[128,128], index: 5, kind: input, shape index: {}]
  %s6 = inlined_call_operand.vmem [shape: f32[1,128], index: 6, kind: input, shape index: {}]
  %s7 = inlined_call_operand.hbm [shape: bf16[8,128], index: 7, kind: output, shape index: {}]
  %s8 = sld [smem:[#allocation0]]
  $region54: #{tpu_custom_call.1} parent=0
    _
  %s10 = ssub.s32 1, %s8
  %s11 = scalar_select 0, %s10, %s8
  $region1: #{tpu_custom_call.1} parent=0
    #allocation2 [shape = 'u8[4096]{0}', space=vmem, size = 0x1000, scoped, tag = 'input window, operand 0, single buffered']
    #allocation3 [shape = 's32[1]{0}', space=sflag, size = 0x4, scoped, tag = 'scoped memory for tpu_custom_call.1']
    #allocation4 [shape = 's32[1]{0}', space=sflag, size = 0x4, scoped, tag = 'scoped memory for tpu_custom_call.1']
    #allocation5 [shape = 'u8[262144]{0}', space=vmem, size = 0x40000, scoped, tag = 'input window, operand 1, single buffered']
    #allocation6 [shape = 's32[1]{0}', space=sflag, size = 0x4, scoped, tag = 'scoped memory for tpu_custom_call.1']
    #allocation7 [shape = 'u8[32768]{0}', space=vmem, size = 0x8000, scoped, tag = 'input window, operand 3, single buffered']
    #allocation8 [shape = 'u8[32768]{0}', space=vmem, size = 0x8000, scoped, tag = 'input window, operand 5, single buffered']
    #allocation9 [shape = 's32[1]{0}', space=sflag, size = 0x4, scoped, tag = 'scoped memory for tpu_custom_call.1']
    #allocation10 [shape = 'u8[2048]{0}', space=vmem, size = 0x800, scoped, tag = 'output window, operand 0, single buffered']
    %12 = vsyncpa [#allocation3], 0
    %13 = vsyncpa [#allocation6], 0
    %14 = vsyncpa [#allocation9], 0
    %15 = vsyncpa [#allocation4], 0
    // Predicated region
    $region2: #{tpu_custom_call.1} parent=1 // pred_check
      _
    $region3: #{tpu_custom_call.1} parent=1 // pred_check_branch
      %17 = sbr.rel (0) target = $region5
    $region4: #{tpu_custom_call.1} parent=1 // pred_region
      %s19 = ssub.s32 128, 128
      %20 = vsyncadd [#allocation3], %s19
      %s22 = sshll.u32 [#allocation2], 4
      %s23 = int_to_ptr.vmem [resolvable:$true] %s22
      %25 = dma.hbm_to_vmem [thread:$0]  %s0, 128, %s23, [#allocation3]
    $region5: #{tpu_custom_call.1} parent=1 // pred_fallthru
      _
    // Predicated region
    $region6: #{tpu_custom_call.1} parent=1 // pred_check
      _
    $region7: #{tpu_custom_call.1} parent=1 // pred_check_branch
      %27 = sbr.rel (0) target = $region9
    $region8: #{tpu_custom_call.1} parent=1 // pred_region
      %s29 = ssub.s32 8192, 8192
      %30 = vsyncadd [#allocation6], %s29
      %s31 = sshll.u32 [#allocation5], 4
      %s32 = int_to_ptr.vmem [resolvable:$true] %s31
      %37 = dma.hbm_to_vmem [thread:$0]  %s1, 8192, %s32, [#allocation6], 64, 64, 4
    $region9: #{tpu_custom_call.1} parent=1 // pred_fallthru
      _
    // Predicated region
    $region10: #{tpu_custom_call.1} parent=1 // pred_check
      _
    $region11: #{tpu_custom_call.1} parent=1 // pred_check_branch
      %39 = sbr.rel (0) target = $region13
    $region12: #{tpu_custom_call.1} parent=1 // pred_region
      _
    $region13: #{tpu_custom_call.1} parent=1 // pred_fallthru
      _
    // Predicated region
    $region14: #{tpu_custom_call.1} parent=1 // pred_check
      _
    $region15: #{tpu_custom_call.1} parent=1 // pred_check_branch
      %41 = sbr.rel (0) target = $region17
    $region16: #{tpu_custom_call.1} parent=1 // pred_region
      %s43 = ssub.s32 1024, 1024
      %44 = vsyncadd [#allocation6], %s43
      %s45 = sshll.u32 [#allocation7], 4
      %s46 = int_to_ptr.vmem [resolvable:$true] %s45
      %51 = dma.hbm_to_vmem [thread:$0]  %s3, 1024, %s46, [#allocation6], 64, 64, 4
    $region17: #{tpu_custom_call.1} parent=1 // pred_fallthru
      _
    // Predicated region
    $region18: #{tpu_custom_call.1} parent=1 // pred_check
      _
    $region19: #{tpu_custom_call.1} parent=1 // pred_check_branch
      %53 = sbr.rel (0) target = $region21
    $region20: #{tpu_custom_call.1} parent=1 // pred_region
      _
    $region21: #{tpu_custom_call.1} parent=1 // pred_fallthru
      _
    // Predicated region
    $region22: #{tpu_custom_call.1} parent=1 // pred_check
      _
    $region23: #{tpu_custom_call.1} parent=1 // pred_check_branch
      %55 = sbr.rel (0) target = $region25
    $region24: #{tpu_custom_call.1} parent=1 // pred_region
      %s57 = ssub.s32 1024, 1024
      %58 = vsyncadd [#allocation9], %s57
      %s59 = sshll.u32 [#allocation8], 4
      %s60 = int_to_ptr.vmem [resolvable:$true] %s59
      %65 = dma.hbm_to_vmem [thread:$0]  %s5, 1024, %s60, [#allocation9], 64, 64, 4
    $region25: #{tpu_custom_call.1} parent=1 // pred_fallthru
      _
    // Predicated region
    $region26: #{tpu_custom_call.1} parent=1 // pred_check
      _
    $region27: #{tpu_custom_call.1} parent=1 // pred_check_branch
      %67 = sbr.rel (0) target = $region29
    $region28: #{tpu_custom_call.1} parent=1 // pred_region
      _
    $region29: #{tpu_custom_call.1} parent=1 // pred_fallthru
      _
    // Predicated region
    $region30: #{tpu_custom_call.1} parent=1 // pred_check
      _
    $region31: #{tpu_custom_call.1} parent=1 // pred_check_branch
      %69 = sbr.rel (0) target = $region33
    $region32: #{tpu_custom_call.1} parent=1 // pred_region
      %70 = dma.done [#allocation3], 128
    $region33: #{tpu_custom_call.1} parent=1 // pred_fallthru
      _
    // Predicated region
    $region34: #{tpu_custom_call.1} parent=1 // pred_check
      _
    $region35: #{tpu_custom_call.1} parent=1 // pred_check_branch
      %72 = sbr.rel (0) target = $region37
    $region36: #{tpu_custom_call.1} parent=1 // pred_region
      %73 = dma.done [#allocation6], 8192
    $region37: #{tpu_custom_call.1} parent=1 // pred_fallthru
      _
    // Predicated region
    $region38: #{tpu_custom_call.1} parent=1 // pred_check
      _
    $region39: #{tpu_custom_call.1} parent=1 // pred_check_branch
      %75 = sbr.rel (0) target = $region41
    $region40: #{tpu_custom_call.1} parent=1 // pred_region
      %76 = dma.done [#allocation6], 1024
    $region41: #{tpu_custom_call.1} parent=1 // pred_fallthru
      _
    // Predicated region
    $region42: #{tpu_custom_call.1} parent=1 // pred_check
      _
    $region43: #{tpu_custom_call.1} parent=1 // pred_check_branch
      %78 = sbr.rel (0) target = $region45
    $region44: #{tpu_custom_call.1} parent=1 // pred_region
      %79 = dma.done [#allocation9], 1024
    $region45: #{tpu_custom_call.1} parent=1 // pred_fallthru
      _
    %v81 = vld [vmem:[#allocation2] sm:$0xff]
    %v82 = vlaneseq
    %v83 = vand.u32 %v82, 127
    %84 = vset.pattern.permute.xlu0 0
    %85 = vperm.xlu0 %84, %v81
    %v86 = vpop.permute.xlu0 %85
    %vm87 = vcmp.eq.s32.totalorder %v86, %v83
    %v88 = vsel %vm87, 1, 0
    %v89 = vcvt.s32.f32 %v88
    %v90 = vpack.c.bf16 %v89, %v89
    %v91 = vld [vmem:[#allocation5] sm:$0xf]
    %v92 = vld [vmem:[#allocation5 + $0x4] sm:$0xf]
    %v93 = vld [vmem:[#allocation5 + $0x8] sm:$0xf]
    %v94 = vld [vmem:[#allocation5 + $0xc] sm:$0xf]
    %v95 = vld [vmem:[#allocation5 + $0x10] sm:$0xf]
    %v96 = vld [vmem:[#allocation5 + $0x14] sm:$0xf]
    %v97 = vld [vmem:[#allocation5 + $0x18] sm:$0xf]
    %v98 = vld [vmem:[#allocation5 + $0x1c] sm:$0xf]
    %v99 = vld [vmem:[#allocation5 + $0x20] sm:$0xf]
    %v100 = vld [vmem:[#allocation5 + $0x24] sm:$0xf]
    %v101 = vld [vmem:[#allocation5 + $0x28] sm:$0xf]
    %v102 = vld [vmem:[#allocation5 + $0x2c] sm:$0xf]
    %v103 = vld [vmem:[#allocation5 + $0x30] sm:$0xf]
    %v104 = vld [vmem:[#allocation5 + $0x34] sm:$0xf]
    %v105 = vld [vmem:[#allocation5 + $0x38] sm:$0xf]
    %v106 = vld [vmem:[#allocation5 + $0x3c] sm:$0xf]
    %107 = vset.pattern.permute.xlu0 1
    %108 = vperm.xlu0 %107, %v81
    %v109 = vpop.permute.xlu0 %108
    %vm110 = vcmp.eq.s32.totalorder %v109, %v83
    %v111 = vsel %vm110, 1, 0
    %v112 = vcvt.s32.f32 %v111
    %v113 = vpack.c.bf16 %v112, %v112
    %v114 = vld [vmem:[#allocation5 + $0x40] sm:$0xf]
    %v115 = vld [vmem:[#allocation5 + $0x44] sm:$0xf]
    %v116 = vld [vmem:[#allocation5 + $0x48] sm:$0xf]
    %v117 = vld [vmem:[#allocation5 + $0x4c] sm:$0xf]
    %v118 = vld [vmem:[#allocation5 + $0x50] sm:$0xf]
    %v119 = vld [vmem:[#allocation5 + $0x54] sm:$0xf]
    %v120 = vld [vmem:[#allocation5 + $0x58] sm:$0xf]
    %v121 = vld [vmem:[#allocation5 + $0x5c] sm:$0xf]
    %v122 = vld [vmem:[#allocation5 + $0x60] sm:$0xf]
    %v123 = vld [vmem:[#allocation5 + $0x64] sm:$0xf]
    %v124 = vld [vmem:[#allocation5 + $0x68] sm:$0xf]
    %v125 = vld [vmem:[#allocation5 + $0x6c] sm:$0xf]
    %v126 = vld [vmem:[#allocation5 + $0x70] sm:$0xf]
    %v127 = vld [vmem:[#allocation5 + $0x74] sm:$0xf]
    %v128 = vld [vmem:[#allocation5 + $0x78] sm:$0xf]
    %v129 = vld [vmem:[#allocation5 + $0x7c] sm:$0xf]
    %v146 = vunpack.c.l.b16 %v114
    %v147 = vunpack.c.l.b16 %v115
    %v148 = vunpack.c.l.b16 %v116
    %v149 = vunpack.c.l.b16 %v117
    %v150 = vunpack.c.l.b16 %v118
    %v151 = vunpack.c.l.b16 %v119
    %v152 = vunpack.c.l.b16 %v120
    %v153 = vunpack.c.l.b16 %v121
    %v154 = vunpack.c.l.b16 %v122
    %v155 = vunpack.c.l.b16 %v123
    %v156 = vunpack.c.l.b16 %v124
    %v157 = vunpack.c.l.b16 %v125
    %v158 = vunpack.c.l.b16 %v126
    %v159 = vunpack.c.l.b16 %v127
    %v160 = vunpack.c.l.b16 %v128
    %v161 = vunpack.c.l.b16 %v129
    %v162 = vpack.c.b16 %v147, %v146
    %v163 = vpack.c.b16 %v149, %v148
    %v164 = vpack.c.b16 %v151, %v150
    %v165 = vpack.c.b16 %v153, %v152
    %v166 = vpack.c.b16 %v155, %v154
    %v167 = vpack.c.b16 %v157, %v156
    %v168 = vpack.c.b16 %v159, %v158
    %v169 = vpack.c.b16 %v161, %v160
    %178 = vmatprep.subr.bf16.mxu0 0
    %179 = vmatpush1.bf16.msra.mxu0 %v162
    %180 = vmatprep.subr.bf16.mxu0 0
    %181 = vmatpush1.bf16.msra.mxu0 %v163
    %182 = vmatprep.subr.bf16.mxu0 0
    %183 = vmatpush1.bf16.msra.mxu0 %v164
    %184 = vmatprep.subr.bf16.mxu0 0
    %185 = vmatpush1.bf16.msra.mxu0 %v165
    %186 = vmatprep.subr.bf16.mxu0 0
    %187 = vmatpush1.bf16.msra.mxu0 %v166
    %188 = vmatprep.subr.bf16.mxu0 0
    %189 = vmatpush1.bf16.msra.mxu0 %v167
    %190 = vmatprep.subr.bf16.mxu0 0
    %191 = vmatpush1.bf16.msra.mxu0 %v168
    %192 = vmatprep.subr.bf16.mxu0 0
    %193 = vmatpush1.bf16.msra.mxu0 %v169
    %194 = vmatprep.subr.bf16.mxu0 0
    %195 = vmatpush1.bf16.msra.mxu0 0
    %196 = vmatprep.subr.bf16.mxu0 0
    %197 = vmatpush1.bf16.msra.mxu0 0
    %198 = vmatprep.subr.bf16.mxu0 0
    %199 = vmatpush1.bf16.msra.mxu0 0
    %200 = vmatprep.subr.bf16.mxu0 0
    %201 = vmatpush1.bf16.msra.mxu0 0
    %202 = vmatprep.subr.bf16.mxu0 0
    %203 = vmatpush1.bf16.msra.mxu0 0
    %204 = vmatprep.subr.bf16.mxu0 0
    %205 = vmatpush1.bf16.msra.mxu0 0
    %206 = vmatprep.subr.bf16.mxu0 0
    %207 = vmatpush1.bf16.msra.mxu0 0
    %208 = vmatprep.subr.bf16.mxu0 0
    %209 = vmatpush1.bf16.msra.mxu0 0
    %210 = vmatprep.mubr.bf16.mxu0 0
    %211 = vmatmul.mubr.bf16.gmra.mrb[0].mxu0 %v113
    %v212 = vpop.f32.mrb[0].mxu0
    %v213 = vadd.f32 0.0, %v212
    %v214 = vpop.f32.mrb[0].mxu0
    %v215 = vpop.f32.mrb[0].mxu0
    %v216 = vpop.f32.mrb[0].mxu0
    %217 = vdwg.mxu0
    %v234 = vunpack.c.l.b16 %v91
    %v235 = vunpack.c.l.b16 %v92
    %v236 = vunpack.c.l.b16 %v93
    %v237 = vunpack.c.l.b16 %v94
    %v238 = vunpack.c.l.b16 %v95
    %v239 = vunpack.c.l.b16 %v96
    %v240 = vunpack.c.l.b16 %v97
    %v241 = vunpack.c.l.b16 %v98
    %v242 = vunpack.c.l.b16 %v99
    %v243 = vunpack.c.l.b16 %v100
    %v244 = vunpack.c.l.b16 %v101
    %v245 = vunpack.c.l.b16 %v102
    %v246 = vunpack.c.l.b16 %v103
    %v247 = vunpack.c.l.b16 %v104
    %v248 = vunpack.c.l.b16 %v105
    %v249 = vunpack.c.l.b16 %v106
    %v250 = vpack.c.b16 %v235, %v234
    %v251 = vpack.c.b16 %v237, %v236
    %v252 = vpack.c.b16 %v239, %v238
    %v253 = vpack.c.b16 %v241, %v240
    %v254 = vpack.c.b16 %v243, %v242
    %v255 = vpack.c.b16 %v245, %v244
    %v256 = vpack.c.b16 %v247, %v246
    %v257 = vpack.c.b16 %v249, %v248
    %266 = vmatprep.subr.bf16.mxu0 0
    %267 = vmatpush1.bf16.msra.mxu0 %v250
    %268 = vmatprep.subr.bf16.mxu0 0
    %269 = vmatpush1.bf16.msra.mxu0 %v251
    %270 = vmatprep.subr.bf16.mxu0 0
    %271 = vmatpush1.bf16.msra.mxu0 %v252
    %272 = vmatprep.subr.bf16.mxu0 0
    %273 = vmatpush1.bf16.msra.mxu0 %v253
    %274 = vmatprep.subr.bf16.mxu0 0
    %275 = vmatpush1.bf16.msra.mxu0 %v254
    %276 = vmatprep.subr.bf16.mxu0 0
    %277 = vmatpush1.bf16.msra.mxu0 %v255
    %278 = vmatprep.subr.bf16.mxu0 0
    %279 = vmatpush1.bf16.msra.mxu0 %v256
    %280 = vmatprep.subr.bf16.mxu0 0
    %281 = vmatpush1.bf16.msra.mxu0 %v257
    %282 = vmatprep.subr.bf16.mxu0 0
    %283 = vmatpush1.bf16.msra.mxu0 0
    %284 = vmatprep.subr.bf16.mxu0 0
    %285 = vmatpush1.bf16.msra.mxu0 0
    %286 = vmatprep.subr.bf16.mxu0 0
    %287 = vmatpush1.bf16.msra.mxu0 0
    %288 = vmatprep.subr.bf16.mxu0 0
    %289 = vmatpush1.bf16.msra.mxu0 0
    %290 = vmatprep.subr.bf16.mxu0 0
    %291 = vmatpush1.bf16.msra.mxu0 0
    %292 = vmatprep.subr.bf16.mxu0 0
    %293 = vmatpush1.bf16.msra.mxu0 0
    %294 = vmatprep.subr.bf16.mxu0 0
    %295 = vmatpush1.bf16.msra.mxu0 0
    %296 = vmatprep.subr.bf16.mxu0 0
    %297 = vmatpush1.bf16.msra.mxu0 0
    %298 = vmatprep.mubr.bf16.mxu0 0
    %299 = vmatmul.mubr.bf16.gmra.mrb[0].mxu0 %v90
    %v300 = vpop.f32.mrb[0].mxu0
    %v301 = vadd.f32 %v213, %v300
    %v302 = vpop.f32.mrb[0].mxu0
    %v303 = vpop.f32.mrb[0].mxu0
    %v304 = vpop.f32.mrb[0].mxu0
    %305 = vdwg.mxu0
    %306 = vset.pattern.permute.xlu0 2
    %307 = vperm.xlu0 %306, %v81
    %v308 = vpop.permute.xlu0 %307
    %vm309 = vcmp.eq.s32.totalorder %v308, %v83
    %v310 = vsel %vm309, 1, 0
    %v311 = vcvt.s32.f32 %v310
    %v312 = vpack.c.bf16 %v311, %v311
    %v313 = vld [vmem:[#allocation5 + $0x80] sm:$0xf]
    %v314 = vld [vmem:[#allocation5 + $0x84] sm:$0xf]
    %v315 = vld [vmem:[#allocation5 + $0x88] sm:$0xf]
    %v316 = vld [vmem:[#allocation5 + $0x8c] sm:$0xf]
    %v317 = vld [vmem:[#allocation5 + $0x90] sm:$0xf]
    %v318 = vld [vmem:[#allocation5 + $0x94] sm:$0xf]
    %v319 = vld [vmem:[#allocation5 + $0x98] sm:$0xf]
    %v320 = vld [vmem:[#allocation5 + $0x9c] sm:$0xf]
    %v321 = vld [vmem:[#allocation5 + $0xa0] sm:$0xf]
    %v322 = vld [vmem:[#allocation5 + $0xa4] sm:$0xf]
    %v323 = vld [vmem:[#allocation5 + $0xa8] sm:$0xf]
    %v324 = vld [vmem:[#allocation5 + $0xac] sm:$0xf]
    %v325 = vld [vmem:[#allocation5 + $0xb0] sm:$0xf]
    %v326 = vld [vmem:[#allocation5 + $0xb4] sm:$0xf]
    %v327 = vld [vmem:[#allocation5 + $0xb8] sm:$0xf]
    %v328 = vld [vmem:[#allocation5 + $0xbc] sm:$0xf]
    %v345 = vunpack.c.l.b16 %v313
    %v346 = vunpack.c.l.b16 %v314
    %v347 = vunpack.c.l.b16 %v315
    %v348 = vunpack.c.l.b16 %v316
    %v349 = vunpack.c.l.b16 %v317
    %v350 = vunpack.c.l.b16 %v318
    %v351 = vunpack.c.l.b16 %v319
    %v352 = vunpack.c.l.b16 %v320
    %v353 = vunpack.c.l.b16 %v321
    %v354 = vunpack.c.l.b16 %v322
    %v355 = vunpack.c.l.b16 %v323
    %v356 = vunpack.c.l.b16 %v324
    %v357 = vunpack.c.l.b16 %v325
    %v358 = vunpack.c.l.b16 %v326
    %v359 = vunpack.c.l.b16 %v327
    %v360 = vunpack.c.l.b16 %v328
    %v361 = vpack.c.b16 %v346, %v345
    %v362 = vpack.c.b16 %v348, %v347
    %v363 = vpack.c.b16 %v350, %v349
    %v364 = vpack.c.b16 %v352, %v351
    %v365 = vpack.c.b16 %v354, %v353
    %v366 = vpack.c.b16 %v356, %v355
    %v367 = vpack.c.b16 %v358, %v357
    %v368 = vpack.c.b16 %v360, %v359
    %377 = vmatprep.subr.bf16.mxu0 0
    %378 = vmatpush1.bf16.msra.mxu0 %v361
    %379 = vmatprep.subr.bf16.mxu0 0
    %380 = vmatpush1.bf16.msra.mxu0 %v362
    %381 = vmatprep.subr.bf16.mxu0 0
    %382 = vmatpush1.bf16.msra.mxu0 %v363
    %383 = vmatprep.subr.bf16.mxu0 0
    %384 = vmatpush1.bf16.msra.mxu0 %v364
    %385 = vmatprep.subr.bf16.mxu0 0
    %386 = vmatpush1.bf16.msra.mxu0 %v365
    %387 = vmatprep.subr.bf16.mxu0 0
    %388 = vmatpush1.bf16.msra.mxu0 %v366
    %389 = vmatprep.subr.bf16.mxu0 0
    %390 = vmatpush1.bf16.msra.mxu0 %v367
    %391 = vmatprep.subr.bf16.mxu0 0
    %392 = vmatpush1.bf16.msra.mxu0 %v368
    %393 = vmatprep.subr.bf16.mxu0 0
    %394 = vmatpush1.bf16.msra.mxu0 0
    %395 = vmatprep.subr.bf16.mxu0 0
    %396 = vmatpush1.bf16.msra.mxu0 0
    %397 = vmatprep.subr.bf16.mxu0 0
    %398 = vmatpush1.bf16.msra.mxu0 0
    %399 = vmatprep.subr.bf16.mxu0 0
    %400 = vmatpush1.bf16.msra.mxu0 0
    %401 = vmatprep.subr.bf16.mxu0 0
    %402 = vmatpush1.bf16.msra.mxu0 0
    %403 = vmatprep.subr.bf16.mxu0 0
    %404 = vmatpush1.bf16.msra.mxu0 0
    %405 = vmatprep.subr.bf16.mxu0 0
    %406 = vmatpush1.bf16.msra.mxu0 0
    %407 = vmatprep.subr.bf16.mxu0 0
    %408 = vmatpush1.bf16.msra.mxu0 0
    %409 = vmatprep.mubr.bf16.mxu0 0
    %410 = vmatmul.mubr.bf16.gmra.mrb[0].mxu0 %v312
    %v411 = vpop.f32.mrb[0].mxu0
    %v412 = vadd.f32 0.0, %v411
    %v413 = vpop.f32.mrb[0].mxu0
    %v414 = vpop.f32.mrb[0].mxu0
    %v415 = vpop.f32.mrb[0].mxu0
    %416 = vdwg.mxu0
    %v417 = vadd.f32 %v301, %v412
    %418 = vset.pattern.permute.xlu0 3
    %419 = vperm.xlu0 %418, %v81
    %v420 = vpop.permute.xlu0 %419
    %vm421 = vcmp.eq.s32.totalorder %v420, %v83
    %v422 = vsel %vm421, 1, 0
    %v423 = vcvt.s32.f32 %v422
    %v424 = vpack.c.bf16 %v423, %v423
    %v425 = vld [vmem:[#allocation5 + $0xc0] sm:$0xf]
    %v426 = vld [vmem:[#allocation5 + $0xc4] sm:$0xf]
    %v427 = vld [vmem:[#allocation5 + $0xc8] sm:$0xf]
    %v428 = vld [vmem:[#allocation5 + $0xcc] sm:$0xf]
    %v429 = vld [vmem:[#allocation5 + $0xd0] sm:$0xf]
    %v430 = vld [vmem:[#allocation5 + $0xd4] sm:$0xf]
    %v431 = vld [vmem:[#allocation5 + $0xd8] sm:$0xf]
    %v432 = vld [vmem:[#allocation5 + $0xdc] sm:$0xf]
    %v433 = vld [vmem:[#allocation5 + $0xe0] sm:$0xf]
    %v434 = vld [vmem:[#allocation5 + $0xe4] sm:$0xf]
    %v435 = vld [vmem:[#allocation5 + $0xe8] sm:$0xf]
    %v436 = vld [vmem:[#allocation5 + $0xec] sm:$0xf]
    %v437 = vld [vmem:[#allocation5 + $0xf0] sm:$0xf]
    %v438 = vld [vmem:[#allocation5 + $0xf4] sm:$0xf]
    %v439 = vld [vmem:[#allocation5 + $0xf8] sm:$0xf]
    %v440 = vld [vmem:[#allocation5 + $0xfc] sm:$0xf]
    %v457 = vunpack.c.l.b16 %v425
    %v458 = vunpack.c.l.b16 %v426
    %v459 = vunpack.c.l.b16 %v427
    %v460 = vunpack.c.l.b16 %v428
    %v461 = vunpack.c.l.b16 %v429
    %v462 = vunpack.c.l.b16 %v430
    %v463 = vunpack.c.l.b16 %v431
    %v464 = vunpack.c.l.b16 %v432
    %v465 = vunpack.c.l.b16 %v433
    %v466 = vunpack.c.l.b16 %v434
    %v467 = vunpack.c.l.b16 %v435
    %v468 = vunpack.c.l.b16 %v436
    %v469 = vunpack.c.l.b16 %v437
    %v470 = vunpack.c.l.b16 %v438
    %v471 = vunpack.c.l.b16 %v439
    %v472 = vunpack.c.l.b16 %v440
    %v473 = vpack.c.b16 %v458, %v457
    %v474 = vpack.c.b16 %v460, %v459
    %v475 = vpack.c.b16 %v462, %v461
    %v476 = vpack.c.b16 %v464, %v463
    %v477 = vpack.c.b16 %v466, %v465
    %v478 = vpack.c.b16 %v468, %v467
    %v479 = vpack.c.b16 %v470, %v469
    %v480 = vpack.c.b16 %v472, %v471
    %489 = vmatprep.subr.bf16.mxu0 0
    %490 = vmatpush1.bf16.msra.mxu0 %v473
    %491 = vmatprep.subr.bf16.mxu0 0
    %492 = vmatpush1.bf16.msra.mxu0 %v474
    %493 = vmatprep.subr.bf16.mxu0 0
    %494 = vmatpush1.bf16.msra.mxu0 %v475
    %495 = vmatprep.subr.bf16.mxu0 0
    %496 = vmatpush1.bf16.msra.mxu0 %v476
    %497 = vmatprep.subr.bf16.mxu0 0
    %498 = vmatpush1.bf16.msra.mxu0 %v477
    %499 = vmatprep.subr.bf16.mxu0 0
    %500 = vmatpush1.bf16.msra.mxu0 %v478
    %501 = vmatprep.subr.bf16.mxu0 0
    %502 = vmatpush1.bf16.msra.mxu0 %v479
    %503 = vmatprep.subr.bf16.mxu0 0
    %504 = vmatpush1.bf16.msra.mxu0 %v480
    %505 = vmatprep.subr.bf16.mxu0 0
    %506 = vmatpush1.bf16.msra.mxu0 0
    %507 = vmatprep.subr.bf16.mxu0 0
    %508 = vmatpush1.bf16.msra.mxu0 0
    %509 = vmatprep.subr.bf16.mxu0 0
    %510 = vmatpush1.bf16.msra.mxu0 0
    %511 = vmatprep.subr.bf16.mxu0 0
    %512 = vmatpush1.bf16.msra.mxu0 0
    %513 = vmatprep.subr.bf16.mxu0 0
    %514 = vmatpush1.bf16.msra.mxu0 0
    %515 = vmatprep.subr.bf16.mxu0 0
    %516 = vmatpush1.bf16.msra.mxu0 0
    %517 = vmatprep.subr.bf16.mxu0 0
    %518 = vmatpush1.bf16.msra.mxu0 0
    %519 = vmatprep.subr.bf16.mxu0 0
    %520 = vmatpush1.bf16.msra.mxu0 0
    %521 = vmatprep.mubr.bf16.mxu0 0
    %522 = vmatmul.mubr.bf16.gmra.mrb[0].mxu0 %v424
    %v523 = vpop.f32.mrb[0].mxu0
    %v524 = vadd.f32 0.0, %v523
    %v525 = vpop.f32.mrb[0].mxu0
    %v526 = vpop.f32.mrb[0].mxu0
    %v527 = vpop.f32.mrb[0].mxu0
    %528 = vdwg.mxu0
    %v529 = vadd.f32 %v417, %v524
    %530 = vset.pattern.permute.xlu0 4
    %531 = vperm.xlu0 %530, %v81
    %v532 = vpop.permute.xlu0 %531
    %vm533 = vcmp.eq.s32.totalorder %v532, %v83
    %v534 = vsel %vm533, 1, 0
    %v535 = vcvt.s32.f32 %v534
    %v536 = vpack.c.bf16 %v535, %v535
    %v537 = vld [vmem:[#allocation5 + $0x100] sm:$0xf]
    %v538 = vld [vmem:[#allocation5 + $0x104] sm:$0xf]
    %v539 = vld [vmem:[#allocation5 + $0x108] sm:$0xf]
    %v540 = vld [vmem:[#allocation5 + $0x10c] sm:$0xf]
    %v541 = vld [vmem:[#allocation5 + $0x110] sm:$0xf]
    %v542 = vld [vmem:[#allocation5 + $0x114] sm:$0xf]
    %v543 = vld [vmem:[#allocation5 + $0x118] sm:$0xf]
    %v544 = vld [vmem:[#allocation5 + $0x11c] sm:$0xf]
    %v545 = vld [vmem:[#allocation5 + $0x120] sm:$0xf]
    %v546 = vld [vmem:[#allocation5 + $0x124] sm:$0xf]
    %v547 = vld [vmem:[#allocation5 + $0x128] sm:$0xf]
    %v548 = vld [vmem:[#allocation5 + $0x12c] sm:$0xf]
    %v549 = vld [vmem:[#allocation5 + $0x130] sm:$0xf]
    %v550 = vld [vmem:[#allocation5 + $0x134] sm:$0xf]
    %v551 = vld [vmem:[#allocation5 + $0x138] sm:$0xf]
    %v552 = vld [vmem:[#allocation5 + $0x13c] sm:$0xf]
    %v569 = vunpack.c.l.b16 %v537
    %v570 = vunpack.c.l.b16 %v538
    %v571 = vunpack.c.l.b16 %v539
    %v572 = vunpack.c.l.b16 %v540
    %v573 = vunpack.c.l.b16 %v541
    %v574 = vunpack.c.l.b16 %v542
    %v575 = vunpack.c.l.b16 %v543
    %v576 = vunpack.c.l.b16 %v544
    %v577 = vunpack.c.l.b16 %v545
    %v578 = vunpack.c.l.b16 %v546
    %v579 = vunpack.c.l.b16 %v547
    %v580 = vunpack.c.l.b16 %v548
    %v581 = vunpack.c.l.b16 %v549
    %v582 = vunpack.c.l.b16 %v550
    %v583 = vunpack.c.l.b16 %v551
    %v584 = vunpack.c.l.b16 %v552
    %v585 = vpack.c.b16 %v570, %v569
    %v586 = vpack.c.b16 %v572, %v571
    %v587 = vpack.c.b16 %v574, %v573
    %v588 = vpack.c.b16 %v576, %v575
    %v589 = vpack.c.b16 %v578, %v577
    %v590 = vpack.c.b16 %v580, %v579
    %v591 = vpack.c.b16 %v582, %v581
    %v592 = vpack.c.b16 %v584, %v583
    %601 = vmatprep.subr.bf16.mxu0 0
    %602 = vmatpush1.bf16.msra.mxu0 %v585
    %603 = vmatprep.subr.bf16.mxu0 0
    %604 = vmatpush1.bf16.msra.mxu0 %v586
    %605 = vmatprep.subr.bf16.mxu0 0
    %606 = vmatpush1.bf16.msra.mxu0 %v587
    %607 = vmatprep.subr.bf16.mxu0 0
    %608 = vmatpush1.bf16.msra.mxu0 %v588
    %609 = vmatprep.subr.bf16.mxu0 0
    %610 = vmatpush1.bf16.msra.mxu0 %v589
    %611 = vmatprep.subr.bf16.mxu0 0
    %612 = vmatpush1.bf16.msra.mxu0 %v590
    %613 = vmatprep.subr.bf16.mxu0 0
    %614 = vmatpush1.bf16.msra.mxu0 %v591
    %615 = vmatprep.subr.bf16.mxu0 0
    %616 = vmatpush1.bf16.msra.mxu0 %v592
    %617 = vmatprep.subr.bf16.mxu0 0
    %618 = vmatpush1.bf16.msra.mxu0 0
    %619 = vmatprep.subr.bf16.mxu0 0
    %620 = vmatpush1.bf16.msra.mxu0 0
    %621 = vmatprep.subr.bf16.mxu0 0
    %622 = vmatpush1.bf16.msra.mxu0 0
    %623 = vmatprep.subr.bf16.mxu0 0
    %624 = vmatpush1.bf16.msra.mxu0 0
    %625 = vmatprep.subr.bf16.mxu0 0
    %626 = vmatpush1.bf16.msra.mxu0 0
    %627 = vmatprep.subr.bf16.mxu0 0
    %628 = vmatpush1.bf16.msra.mxu0 0
    %629 = vmatprep.subr.bf16.mxu0 0
    %630 = vmatpush1.bf16.msra.mxu0 0
    %631 = vmatprep.subr.bf16.mxu0 0
    %632 = vmatpush1.bf16.msra.mxu0 0
    %633 = vmatprep.mubr.bf16.mxu0 0
    %634 = vmatmul.mubr.bf16.gmra.mrb[0].mxu0 %v536
    %v635 = vpop.f32.mrb[0].mxu0
    %v636 = vadd.f32 0.0, %v635
    %v637 = vpop.f32.mrb[0].mxu0
    %v638 = vpop.f32.mrb[0].mxu0
    %v639 = vpop.f32.mrb[0].mxu0
    %640 = vdwg.mxu0
    %v641 = vadd.f32 %v529, %v636
    %642 = vset.pattern.permute.xlu0 5
    %643 = vperm.xlu0 %642, %v81
    %v644 = vpop.permute.xlu0 %643
    %vm645 = vcmp.eq.s32.totalorder %v644, %v83
    %v646 = vsel %vm645, 1, 0
    %v647 = vcvt.s32.f32 %v646
    %v648 = vpack.c.bf16 %v647, %v647
    %v649 = vld [vmem:[#allocation5 + $0x140] sm:$0xf]
    %v650 = vld [vmem:[#allocation5 + $0x144] sm:$0xf]
    %v651 = vld [vmem:[#allocation5 + $0x148] sm:$0xf]
    %v652 = vld [vmem:[#allocation5 + $0x14c] sm:$0xf]
    %v653 = vld [vmem:[#allocation5 + $0x150] sm:$0xf]
    %v654 = vld [vmem:[#allocation5 + $0x154] sm:$0xf]
    %v655 = vld [vmem:[#allocation5 + $0x158] sm:$0xf]
    %v656 = vld [vmem:[#allocation5 + $0x15c] sm:$0xf]
    %v657 = vld [vmem:[#allocation5 + $0x160] sm:$0xf]
    %v658 = vld [vmem:[#allocation5 + $0x164] sm:$0xf]
    %v659 = vld [vmem:[#allocation5 + $0x168] sm:$0xf]
    %v660 = vld [vmem:[#allocation5 + $0x16c] sm:$0xf]
    %v661 = vld [vmem:[#allocation5 + $0x170] sm:$0xf]
    %v662 = vld [vmem:[#allocation5 + $0x174] sm:$0xf]
    %v663 = vld [vmem:[#allocation5 + $0x178] sm:$0xf]
    %v664 = vld [vmem:[#allocation5 + $0x17c] sm:$0xf]
    %v681 = vunpack.c.l.b16 %v649
    %v682 = vunpack.c.l.b16 %v650
    %v683 = vunpack.c.l.b16 %v651
    %v684 = vunpack.c.l.b16 %v652
    %v685 = vunpack.c.l.b16 %v653
    %v686 = vunpack.c.l.b16 %v654
    %v687 = vunpack.c.l.b16 %v655
    %v688 = vunpack.c.l.b16 %v656
    %v689 = vunpack.c.l.b16 %v657
    %v690 = vunpack.c.l.b16 %v658
    %v691 = vunpack.c.l.b16 %v659
    %v692 = vunpack.c.l.b16 %v660
    %v693 = vunpack.c.l.b16 %v661
    %v694 = vunpack.c.l.b16 %v662
    %v695 = vunpack.c.l.b16 %v663
    %v696 = vunpack.c.l.b16 %v664
    %v697 = vpack.c.b16 %v682, %v681
    %v698 = vpack.c.b16 %v684, %v683
    %v699 = vpack.c.b16 %v686, %v685
    %v700 = vpack.c.b16 %v688, %v687
    %v701 = vpack.c.b16 %v690, %v689
    %v702 = vpack.c.b16 %v692, %v691
    %v703 = vpack.c.b16 %v694, %v693
    %v704 = vpack.c.b16 %v696, %v695
    %713 = vmatprep.subr.bf16.mxu0 0
    %714 = vmatpush1.bf16.msra.mxu0 %v697
    %715 = vmatprep.subr.bf16.mxu0 0
    %716 = vmatpush1.bf16.msra.mxu0 %v698
    %717 = vmatprep.subr.bf16.mxu0 0
    %718 = vmatpush1.bf16.msra.mxu0 %v699
    %719 = vmatprep.subr.bf16.mxu0 0
    %720 = vmatpush1.bf16.msra.mxu0 %v700
    %721 = vmatprep.subr.bf16.mxu0 0
    %722 = vmatpush1.bf16.msra.mxu0 %v701
    %723 = vmatprep.subr.bf16.mxu0 0
    %724 = vmatpush1.bf16.msra.mxu0 %v702
    %725 = vmatprep.subr.bf16.mxu0 0
    %726 = vmatpush1.bf16.msra.mxu0 %v703
    %727 = vmatprep.subr.bf16.mxu0 0
    %728 = vmatpush1.bf16.msra.mxu0 %v704
    %729 = vmatprep.subr.bf16.mxu0 0
    %730 = vmatpush1.bf16.msra.mxu0 0
    %731 = vmatprep.subr.bf16.mxu0 0
    %732 = vmatpush1.bf16.msra.mxu0 0
    %733 = vmatprep.subr.bf16.mxu0 0
    %734 = vmatpush1.bf16.msra.mxu0 0
    %735 = vmatprep.subr.bf16.mxu0 0
    %736 = vmatpush1.bf16.msra.mxu0 0
    %737 = vmatprep.subr.bf16.mxu0 0
    %738 = vmatpush1.bf16.msra.mxu0 0
    %739 = vmatprep.subr.bf16.mxu0 0
    %740 = vmatpush1.bf16.msra.mxu0 0
    %741 = vmatprep.subr.bf16.mxu0 0
    %742 = vmatpush1.bf16.msra.mxu0 0
    %743 = vmatprep.subr.bf16.mxu0 0
    %744 = vmatpush1.bf16.msra.mxu0 0
    %745 = vmatprep.mubr.bf16.mxu0 0
    %746 = vmatmul.mubr.bf16.gmra.mrb[0].mxu0 %v648
    %v747 = vpop.f32.mrb[0].mxu0
    %v748 = vadd.f32 0.0, %v747
    %v749 = vpop.f32.mrb[0].mxu0
    %v750 = vpop.f32.mrb[0].mxu0
    %v751 = vpop.f32.mrb[0].mxu0
    %752 = vdwg.mxu0
    %v753 = vadd.f32 %v641, %v748
    %754 = vset.pattern.permute.xlu0 6
    %755 = vperm.xlu0 %754, %v81
    %v756 = vpop.permute.xlu0 %755
    %vm757 = vcmp.eq.s32.totalorder %v756, %v83
    %v758 = vsel %vm757, 1, 0
    %v759 = vcvt.s32.f32 %v758
    %v760 = vpack.c.bf16 %v759, %v759
    %v761 = vld [vmem:[#allocation5 + $0x180] sm:$0xf]
    %v762 = vld [vmem:[#allocation5 + $0x184] sm:$0xf]
    %v763 = vld [vmem:[#allocation5 + $0x188] sm:$0xf]
    %v764 = vld [vmem:[#allocation5 + $0x18c] sm:$0xf]
    %v765 = vld [vmem:[#allocation5 + $0x190] sm:$0xf]
    %v766 = vld [vmem:[#allocation5 + $0x194] sm:$0xf]
    %v767 = vld [vmem:[#allocation5 + $0x198] sm:$0xf]
    %v768 = vld [vmem:[#allocation5 + $0x19c] sm:$0xf]
    %v769 = vld [vmem:[#allocation5 + $0x1a0] sm:$0xf]
    %v770 = vld [vmem:[#allocation5 + $0x1a4] sm:$0xf]
    %v771 = vld [vmem:[#allocation5 + $0x1a8] sm:$0xf]
    %v772 = vld [vmem:[#allocation5 + $0x1ac] sm:$0xf]
    %v773 = vld [vmem:[#allocation5 + $0x1b0] sm:$0xf]
    %v774 = vld [vmem:[#allocation5 + $0x1b4] sm:$0xf]
    %v775 = vld [vmem:[#allocation5 + $0x1b8] sm:$0xf]
    %v776 = vld [vmem:[#allocation5 + $0x1bc] sm:$0xf]
    %v793 = vunpack.c.l.b16 %v761
    %v794 = vunpack.c.l.b16 %v762
    %v795 = vunpack.c.l.b16 %v763
    %v796 = vunpack.c.l.b16 %v764
    %v797 = vunpack.c.l.b16 %v765
    %v798 = vunpack.c.l.b16 %v766
    %v799 = vunpack.c.l.b16 %v767
    %v800 = vunpack.c.l.b16 %v768
    %v801 = vunpack.c.l.b16 %v769
    %v802 = vunpack.c.l.b16 %v770
    %v803 = vunpack.c.l.b16 %v771
    %v804 = vunpack.c.l.b16 %v772
    %v805 = vunpack.c.l.b16 %v773
    %v806 = vunpack.c.l.b16 %v774
    %v807 = vunpack.c.l.b16 %v775
    %v808 = vunpack.c.l.b16 %v776
    %v809 = vpack.c.b16 %v794, %v793
    %v810 = vpack.c.b16 %v796, %v795
    %v811 = vpack.c.b16 %v798, %v797
    %v812 = vpack.c.b16 %v800, %v799
    %v813 = vpack.c.b16 %v802, %v801
    %v814 = vpack.c.b16 %v804, %v803
    %v815 = vpack.c.b16 %v806, %v805
    %v816 = vpack.c.b16 %v808, %v807
    %825 = vmatprep.subr.bf16.mxu0 0
    %826 = vmatpush1.bf16.msra.mxu0 %v809
    %827 = vmatprep.subr.bf16.mxu0 0
    %828 = vmatpush1.bf16.msra.mxu0 %v810
    %829 = vmatprep.subr.bf16.mxu0 0
    %830 = vmatpush1.bf16.msra.mxu0 %v811
    %831 = vmatprep.subr.bf16.mxu0 0
    %832 = vmatpush1.bf16.msra.mxu0 %v812
    %833 = vmatprep.subr.bf16.mxu0 0
    %834 = vmatpush1.bf16.msra.mxu0 %v813
    %835 = vmatprep.subr.bf16.mxu0 0
    %836 = vmatpush1.bf16.msra.mxu0 %v814
    %837 = vmatprep.subr.bf16.mxu0 0
    %838 = vmatpush1.bf16.msra.mxu0 %v815
    %839 = vmatprep.subr.bf16.mxu0 0
    %840 = vmatpush1.bf16.msra.mxu0 %v816
    %841 = vmatprep.subr.bf16.mxu0 0
    %842 = vmatpush1.bf16.msra.mxu0 0
    %843 = vmatprep.subr.bf16.mxu0 0
    %844 = vmatpush1.bf16.msra.mxu0 0
    %845 = vmatprep.subr.bf16.mxu0 0
    %846 = vmatpush1.bf16.msra.mxu0 0
    %847 = vmatprep.subr.bf16.mxu0 0
    %848 = vmatpush1.bf16.msra.mxu0 0
    %849 = vmatprep.subr.bf16.mxu0 0
    %850 = vmatpush1.bf16.msra.mxu0 0
    %851 = vmatprep.subr.bf16.mxu0 0
    %852 = vmatpush1.bf16.msra.mxu0 0
    %853 = vmatprep.subr.bf16.mxu0 0
    %854 = vmatpush1.bf16.msra.mxu0 0
    %855 = vmatprep.subr.bf16.mxu0 0
    %856 = vmatpush1.bf16.msra.mxu0 0
    %857 = vmatprep.mubr.bf16.mxu0 0
    %858 = vmatmul.mubr.bf16.gmra.mrb[0].mxu0 %v760
    %v859 = vpop.f32.mrb[0].mxu0
    %v860 = vadd.f32 0.0, %v859
    %v861 = vpop.f32.mrb[0].mxu0
    %v862 = vpop.f32.mrb[0].mxu0
    %v863 = vpop.f32.mrb[0].mxu0
    %864 = vdwg.mxu0
    %v865 = vadd.f32 %v753, %v860
    %866 = vset.pattern.permute.xlu0 7
    %867 = vperm.xlu0 %866, %v81
    %v868 = vpop.permute.xlu0 %867
    %vm869 = vcmp.eq.s32.totalorder %v868, %v83
    %v870 = vsel %vm869, 1, 0
    %v871 = vcvt.s32.f32 %v870
    %v872 = vpack.c.bf16 %v871, %v871
    %v873 = vld [vmem:[#allocation5 + $0x1c0] sm:$0xf]
    %v874 = vld [vmem:[#allocation5 + $0x1c4] sm:$0xf]
    %v875 = vld [vmem:[#allocation5 + $0x1c8] sm:$0xf]
    %v876 = vld [vmem:[#allocation5 + $0x1cc] sm:$0xf]
    %v877 = vld [vmem:[#allocation5 + $0x1d0] sm:$0xf]
    %v878 = vld [vmem:[#allocation5 + $0x1d4] sm:$0xf]
    %v879 = vld [vmem:[#allocation5 + $0x1d8] sm:$0xf]
    %v880 = vld [vmem:[#allocation5 + $0x1dc] sm:$0xf]
    %v881 = vld [vmem:[#allocation5 + $0x1e0] sm:$0xf]
    %v882 = vld [vmem:[#allocation5 + $0x1e4] sm:$0xf]
    %v883 = vld [vmem:[#allocation5 + $0x1e8] sm:$0xf]
    %v884 = vld [vmem:[#allocation5 + $0x1ec] sm:$0xf]
    %v885 = vld [vmem:[#allocation5 + $0x1f0] sm:$0xf]
    %v886 = vld [vmem:[#allocation5 + $0x1f4] sm:$0xf]
    %v887 = vld [vmem:[#allocation5 + $0x1f8] sm:$0xf]
    %v888 = vld [vmem:[#allocation5 + $0x1fc] sm:$0xf]
    %v905 = vunpack.c.l.b16 %v873
    %v906 = vunpack.c.l.b16 %v874
    %v907 = vunpack.c.l.b16 %v875
    %v908 = vunpack.c.l.b16 %v876
    %v909 = vunpack.c.l.b16 %v877
    %v910 = vunpack.c.l.b16 %v878
    %v911 = vunpack.c.l.b16 %v879
    %v912 = vunpack.c.l.b16 %v880
    %v913 = vunpack.c.l.b16 %v881
    %v914 = vunpack.c.l.b16 %v882
    %v915 = vunpack.c.l.b16 %v883
    %v916 = vunpack.c.l.b16 %v884
    %v917 = vunpack.c.l.b16 %v885
    %v918 = vunpack.c.l.b16 %v886
    %v919 = vunpack.c.l.b16 %v887
    %v920 = vunpack.c.l.b16 %v888
    %v921 = vpack.c.b16 %v906, %v905
    %v922 = vpack.c.b16 %v908, %v907
    %v923 = vpack.c.b16 %v910, %v909
    %v924 = vpack.c.b16 %v912, %v911
    %v925 = vpack.c.b16 %v914, %v913
    %v926 = vpack.c.b16 %v916, %v915
    %v927 = vpack.c.b16 %v918, %v917
    %v928 = vpack.c.b16 %v920, %v919
    %937 = vmatprep.subr.bf16.mxu0 0
    %938 = vmatpush1.bf16.msra.mxu0 %v921
    %939 = vmatprep.subr.bf16.mxu0 0
    %940 = vmatpush1.bf16.msra.mxu0 %v922
    %941 = vmatprep.subr.bf16.mxu0 0
    %942 = vmatpush1.bf16.msra.mxu0 %v923
    %943 = vmatprep.subr.bf16.mxu0 0
    %944 = vmatpush1.bf16.msra.mxu0 %v924
    %945 = vmatprep.subr.bf16.mxu0 0
    %946 = vmatpush1.bf16.msra.mxu0 %v925
    %947 = vmatprep.subr.bf16.mxu0 0
    %948 = vmatpush1.bf16.msra.mxu0 %v926
    %949 = vmatprep.subr.bf16.mxu0 0
    %950 = vmatpush1.bf16.msra.mxu0 %v927
    %951 = vmatprep.subr.bf16.mxu0 0
    %952 = vmatpush1.bf16.msra.mxu0 %v928
    %953 = vmatprep.subr.bf16.mxu0 0
    %954 = vmatpush1.bf16.msra.mxu0 0
    %955 = vmatprep.subr.bf16.mxu0 0
    %956 = vmatpush1.bf16.msra.mxu0 0
    %957 = vmatprep.subr.bf16.mxu0 0
    %958 = vmatpush1.bf16.msra.mxu0 0
    %959 = vmatprep.subr.bf16.mxu0 0
    %960 = vmatpush1.bf16.msra.mxu0 0
    %961 = vmatprep.subr.bf16.mxu0 0
    %962 = vmatpush1.bf16.msra.mxu0 0
    %963 = vmatprep.subr.bf16.mxu0 0
    %964 = vmatpush1.bf16.msra.mxu0 0
    %965 = vmatprep.subr.bf16.mxu0 0
    %966 = vmatpush1.bf16.msra.mxu0 0
    %967 = vmatprep.subr.bf16.mxu0 0
    %968 = vmatpush1.bf16.msra.mxu0 0
    %969 = vmatprep.mubr.bf16.mxu0 0
    %970 = vmatmul.mubr.bf16.gmra.mrb[0].mxu0 %v872
    %v971 = vpop.f32.mrb[0].mxu0
    %v972 = vadd.f32 0.0, %v971
    %v973 = vpop.f32.mrb[0].mxu0
    %v974 = vpop.f32.mrb[0].mxu0
    %v975 = vpop.f32.mrb[0].mxu0
    %976 = vdwg.mxu0
    %v977 = vadd.f32 %v865, %v972
    %v978 = vld [vmem:[%s2] sm:$0x1]
    %v980 = vlaneseq
    %v981 = vshrl.u32 %v980, 7
    %v982 = vsub.s32 0, %v981
    %v983 = vrot.slane %v978, %v982
    %v985 = vadd.f32 %v977, %v983
    %v986 = vmax.f32 %v985, 0.0
    %v987 = vpack.c.bf16 %v986, %v986
    %v988 = vld [vmem:[#allocation7] sm:$0xf]
    %v989 = vld [vmem:[#allocation7 + $0x4] sm:$0xf]
    %v990 = vld [vmem:[#allocation7 + $0x8] sm:$0xf]
    %v991 = vld [vmem:[#allocation7 + $0xc] sm:$0xf]
    %v992 = vld [vmem:[#allocation7 + $0x10] sm:$0xf]
    %v993 = vld [vmem:[#allocation7 + $0x14] sm:$0xf]
    %v994 = vld [vmem:[#allocation7 + $0x18] sm:$0xf]
    %v995 = vld [vmem:[#allocation7 + $0x1c] sm:$0xf]
    %v996 = vld [vmem:[#allocation7 + $0x20] sm:$0xf]
    %v997 = vld [vmem:[#allocation7 + $0x24] sm:$0xf]
    %v998 = vld [vmem:[#allocation7 + $0x28] sm:$0xf]
    %v999 = vld [vmem:[#allocation7 + $0x2c] sm:$0xf]
    %v1000 = vld [vmem:[#allocation7 + $0x30] sm:$0xf]
    %v1001 = vld [vmem:[#allocation7 + $0x34] sm:$0xf]
    %v1002 = vld [vmem:[#allocation7 + $0x38] sm:$0xf]
    %v1003 = vld [vmem:[#allocation7 + $0x3c] sm:$0xf]
    %v1004 = vld [vmem:[%s4] sm:$0x1]
    %v1006 = vlaneseq
    %v1007 = vshrl.u32 %v1006, 7
    %v1008 = vsub.s32 0, %v1007
    %v1009 = vrot.slane %v1004, %v1008
    %v1027 = vunpack.c.l.b16 %v988
    %v1028 = vunpack.c.l.b16 %v989
    %v1029 = vunpack.c.l.b16 %v990
    %v1030 = vunpack.c.l.b16 %v991
    %v1031 = vunpack.c.l.b16 %v992
    %v1032 = vunpack.c.l.b16 %v993
    %v1033 = vunpack.c.l.b16 %v994
    %v1034 = vunpack.c.l.b16 %v995
    %v1035 = vunpack.c.l.b16 %v996
    %v1036 = vunpack.c.l.b16 %v997
    %v1037 = vunpack.c.l.b16 %v998
    %v1038 = vunpack.c.l.b16 %v999
    %v1039 = vunpack.c.l.b16 %v1000
    %v1040 = vunpack.c.l.b16 %v1001
    %v1041 = vunpack.c.l.b16 %v1002
    %v1042 = vunpack.c.l.b16 %v1003
    %v1043 = vpack.c.b16 %v1028, %v1027
    %v1044 = vpack.c.b16 %v1030, %v1029
    %v1045 = vpack.c.b16 %v1032, %v1031
    %v1046 = vpack.c.b16 %v1034, %v1033
    %v1047 = vpack.c.b16 %v1036, %v1035
    %v1048 = vpack.c.b16 %v1038, %v1037
    %v1049 = vpack.c.b16 %v1040, %v1039
    %v1050 = vpack.c.b16 %v1042, %v1041
    %1059 = vmatprep.subr.bf16.mxu0 0
    %1060 = vmatpush1.bf16.msra.mxu0 %v1043
    %1061 = vmatprep.subr.bf16.mxu0 0
    %1062 = vmatpush1.bf16.msra.mxu0 %v1044
    %1063 = vmatprep.subr.bf16.mxu0 0
    %1064 = vmatpush1.bf16.msra.mxu0 %v1045
    %1065 = vmatprep.subr.bf16.mxu0 0
    %1066 = vmatpush1.bf16.msra.mxu0 %v1046
    %1067 = vmatprep.subr.bf16.mxu0 0
    %1068 = vmatpush1.bf16.msra.mxu0 %v1047
    %1069 = vmatprep.subr.bf16.mxu0 0
    %1070 = vmatpush1.bf16.msra.mxu0 %v1048
    %1071 = vmatprep.subr.bf16.mxu0 0
    %1072 = vmatpush1.bf16.msra.mxu0 %v1049
    %1073 = vmatprep.subr.bf16.mxu0 0
    %1074 = vmatpush1.bf16.msra.mxu0 %v1050
    %1075 = vmatprep.subr.bf16.mxu0 0
    %1076 = vmatpush1.bf16.msra.mxu0 0
    %1077 = vmatprep.subr.bf16.mxu0 0
    %1078 = vmatpush1.bf16.msra.mxu0 0
    %1079 = vmatprep.subr.bf16.mxu0 0
    %1080 = vmatpush1.bf16.msra.mxu0 0
    %1081 = vmatprep.subr.bf16.mxu0 0
    %1082 = vmatpush1.bf16.msra.mxu0 0
    %1083 = vmatprep.subr.bf16.mxu0 0
    %1084 = vmatpush1.bf16.msra.mxu0 0
    %1085 = vmatprep.subr.bf16.mxu0 0
    %1086 = vmatpush1.bf16.msra.mxu0 0
    %1087 = vmatprep.subr.bf16.mxu0 0
    %1088 = vmatpush1.bf16.msra.mxu0 0
    %1089 = vmatprep.subr.bf16.mxu0 0
    %1090 = vmatpush1.bf16.msra.mxu0 0
    %1091 = vmatprep.mubr.bf16.mxu0 0
    %1092 = vmatmul.mubr.bf16.gmra.mrb[0].mxu0 %v987
    %v1093 = vpop.f32.mrb[0].mxu0
    %v1094 = vadd.f32 %v1009, %v1093
    %v1095 = vpop.f32.mrb[0].mxu0
    %v1096 = vpop.f32.mrb[0].mxu0
    %v1097 = vpop.f32.mrb[0].mxu0
    %1098 = vdwg.mxu0
    %v1099 = vmax.f32 %v1094, 0.0
    %v1100 = vpack.c.bf16 %v1099, %v1099
    %v1101 = vld [vmem:[#allocation8] sm:$0xf]
    %v1102 = vld [vmem:[#allocation8 + $0x4] sm:$0xf]
    %v1103 = vld [vmem:[#allocation8 + $0x8] sm:$0xf]
    %v1104 = vld [vmem:[#allocation8 + $0xc] sm:$0xf]
    %v1105 = vld [vmem:[#allocation8 + $0x10] sm:$0xf]
    %v1106 = vld [vmem:[#allocation8 + $0x14] sm:$0xf]
    %v1107 = vld [vmem:[#allocation8 + $0x18] sm:$0xf]
    %v1108 = vld [vmem:[#allocation8 + $0x1c] sm:$0xf]
    %v1109 = vld [vmem:[#allocation8 + $0x20] sm:$0xf]
    %v1110 = vld [vmem:[#allocation8 + $0x24] sm:$0xf]
    %v1111 = vld [vmem:[#allocation8 + $0x28] sm:$0xf]
    %v1112 = vld [vmem:[#allocation8 + $0x2c] sm:$0xf]
    %v1113 = vld [vmem:[#allocation8 + $0x30] sm:$0xf]
    %v1114 = vld [vmem:[#allocation8 + $0x34] sm:$0xf]
    %v1115 = vld [vmem:[#allocation8 + $0x38] sm:$0xf]
    %v1116 = vld [vmem:[#allocation8 + $0x3c] sm:$0xf]
    %v1117 = vld [vmem:[%s6] sm:$0x1]
    %v1119 = vlaneseq
    %v1120 = vshrl.u32 %v1119, 7
    %v1121 = vsub.s32 0, %v1120
    %v1122 = vrot.slane %v1117, %v1121
    %v1140 = vunpack.c.l.b16 %v1101
    %v1141 = vunpack.c.l.b16 %v1102
    %v1142 = vunpack.c.l.b16 %v1103
    %v1143 = vunpack.c.l.b16 %v1104
    %v1144 = vunpack.c.l.b16 %v1105
    %v1145 = vunpack.c.l.b16 %v1106
    %v1146 = vunpack.c.l.b16 %v1107
    %v1147 = vunpack.c.l.b16 %v1108
    %v1148 = vunpack.c.l.b16 %v1109
    %v1149 = vunpack.c.l.b16 %v1110
    %v1150 = vunpack.c.l.b16 %v1111
    %v1151 = vunpack.c.l.b16 %v1112
    %v1152 = vunpack.c.l.b16 %v1113
    %v1153 = vunpack.c.l.b16 %v1114
    %v1154 = vunpack.c.l.b16 %v1115
    %v1155 = vunpack.c.l.b16 %v1116
    %v1156 = vpack.c.b16 %v1141, %v1140
    %v1157 = vpack.c.b16 %v1143, %v1142
    %v1158 = vpack.c.b16 %v1145, %v1144
    %v1159 = vpack.c.b16 %v1147, %v1146
    %v1160 = vpack.c.b16 %v1149, %v1148
    %v1161 = vpack.c.b16 %v1151, %v1150
    %v1162 = vpack.c.b16 %v1153, %v1152
    %v1163 = vpack.c.b16 %v1155, %v1154
    %1172 = vmatprep.subr.bf16.mxu0 0
    %1173 = vmatpush1.bf16.msra.mxu0 %v1156
    %1174 = vmatprep.subr.bf16.mxu0 0
    %1175 = vmatpush1.bf16.msra.mxu0 %v1157
    %1176 = vmatprep.subr.bf16.mxu0 0
    %1177 = vmatpush1.bf16.msra.mxu0 %v1158
    %1178 = vmatprep.subr.bf16.mxu0 0
    %1179 = vmatpush1.bf16.msra.mxu0 %v1159
    %1180 = vmatprep.subr.bf16.mxu0 0
    %1181 = vmatpush1.bf16.msra.mxu0 %v1160
    %1182 = vmatprep.subr.bf16.mxu0 0
    %1183 = vmatpush1.bf16.msra.mxu0 %v1161
    %1184 = vmatprep.subr.bf16.mxu0 0
    %1185 = vmatpush1.bf16.msra.mxu0 %v1162
    %1186 = vmatprep.subr.bf16.mxu0 0
    %1187 = vmatpush1.bf16.msra.mxu0 %v1163
    %1188 = vmatprep.subr.bf16.mxu0 0
    %1189 = vmatpush1.bf16.msra.mxu0 0
    %1190 = vmatprep.subr.bf16.mxu0 0
    %1191 = vmatpush1.bf16.msra.mxu0 0
    %1192 = vmatprep.subr.bf16.mxu0 0
    %1193 = vmatpush1.bf16.msra.mxu0 0
    %1194 = vmatprep.subr.bf16.mxu0 0
    %1195 = vmatpush1.bf16.msra.mxu0 0
    %1196 = vmatprep.subr.bf16.mxu0 0
    %1197 = vmatpush1.bf16.msra.mxu0 0
    %1198 = vmatprep.subr.bf16.mxu0 0
    %1199 = vmatpush1.bf16.msra.mxu0 0
    %1200 = vmatprep.subr.bf16.mxu0 0
    %1201 = vmatpush1.bf16.msra.mxu0 0
    %1202 = vmatprep.subr.bf16.mxu0 0
    %1203 = vmatpush1.bf16.msra.mxu0 0
    %1204 = vmatprep.mubr.bf16.mxu0 0
    %1205 = vmatmul.mubr.bf16.gmra.mrb[0].mxu0 %v1100
    %v1206 = vpop.f32.mrb[0].mxu0
    %v1207 = vadd.f32 %v1122, %v1206
    %v1208 = vpop.f32.mrb[0].mxu0
    %v1209 = vpop.f32.mrb[0].mxu0
    %v1210 = vpop.f32.mrb[0].mxu0
    %1211 = vdwg.mxu0
    %v1212 = vsub.f32 0.0, %v1207
    %v1213 = vmul.f32 %v1212, 1.442695
    %v1214 = vpow.pop %v1213
    %v1215 = vadd.f32 %v1214, 1.0
    %v1216 = vrcp.pop %v1215
    %v1217 = vpack.c.bf16 %v1216, %v1216
    %1218 = vst [vmem:[#allocation10] sm:$0xf] %v1217
    // Predicated region
    $region46: #{tpu_custom_call.1} parent=1 // pred_check
      _
    $region47: #{tpu_custom_call.1} parent=1 // pred_check_branch
      %1220 = sbr.rel (0) target = $region49
    $region48: #{tpu_custom_call.1} parent=1 // pred_region
      %s1222 = ssub.s32 64, 64
      %1223 = vsyncadd [#allocation4], %s1222
      %s1225 = sshll.u32 [#allocation10], 4
      %s1226 = int_to_ptr.vmem [resolvable:$true] %s1225
      %1228 = dma.vmem_to_hbm [thread:$0]  %s1226, 64, %s7, [#allocation4]
    $region49: #{tpu_custom_call.1} parent=1 // pred_fallthru
      _
    // Predicated region
    $region50: #{tpu_custom_call.1} parent=1 // pred_check
      _
    $region51: #{tpu_custom_call.1} parent=1 // pred_check_branch
      %1230 = sbr.rel (0) target = $region53
    $region52: #{tpu_custom_call.1} parent=1 // pred_region
      %1231 = dma.done [#allocation4], 64
    $region53: #{tpu_custom_call.1} parent=1 // pred_fallthru
      _
    %1232 = vsyncpa [#allocation3], 1
    %1233 = vsyncpa [#allocation6], 1
    %1234 = vsyncpa [#allocation9], 1
    %1235 = vsyncpa [#allocation4], 1

</llo_original>
